<compile_context>
chip_gen: v5e
topology: v5e:2x2
jax: 0.10.0
libtpu: 0.0.40
codegen_flags: <defaults>
</compile_context>

<pallas_src>
import functools

import jax
import jax.numpy as jnp
from jax.experimental import pallas as pl
from jax.experimental.pallas import tpu as pltpu

IN_DIM = 9
HIDDEN = 128
OUT_DIM = 9
LANE = 128          # lane-dense padded output width
MAX_TILE_B = 1024   # rows of the batch per grid step (multiple of 16)


def tictactoe_mlp_kernel(x_ref, w1_ref, b1_ref, w2_ref, b2_ref, o_ref):
    # fc1: (TB, 9) bf16 @ (9, 128) bf16 -> f32 accum; bias + ReLU in f32.
    h = jnp.dot(x_ref[...], w1_ref[...], preferred_element_type=jnp.float32)
    h = jnp.maximum(h + b1_ref[...], 0.0)
    # fc2 (output-padded to 128 lanes): (TB, 128) bf16 @ (128, 128) bf16 -> f32.
    out = jnp.dot(h.astype(jnp.bfloat16), w2_ref[...],
                  preferred_element_type=jnp.float32)
    o_ref[...] = (out + b2_ref[...]).astype(o_ref.dtype)


def _round_up(n, m):
    return ((n + m - 1) // m) * m


@functools.partial(jax.jit, static_argnames=("max_tile_b",))
def tictactoe_net_forward(x, w1, b1, w2, b2, *, max_tile_b=MAX_TILE_B):
    """x: (B, 9) f32; w1: (9, 128); b1: (1, 128); w2: (128, 9); b2: (1, 9).

    Weights are stored pre-transposed as (in_features, out_features).
    Returns (B, 9) float32.
    """
    B = x.shape[0]

    # bf16 MXU operands; f32 biases.
    x_bf = x.astype(jnp.bfloat16)
    w1_bf = w1.astype(jnp.bfloat16)
    b1_f32 = b1.astype(jnp.float32)

    # Lane-dense output: zero-pad fc2 to 128 output columns.
    w2_p = jnp.zeros((HIDDEN, LANE), jnp.bfloat16).at[:, :OUT_DIM].set(
        w2.astype(jnp.bfloat16))
    b2_p = jnp.zeros((1, LANE), jnp.float32).at[:, :OUT_DIM].set(
        b2.astype(jnp.float32))

    # Batch tiling: tile is a multiple of 16 (bf16 sublane packing); pad the
    # batch to a whole number of tiles (padded rows are zeros, sliced off).
    tile_b = min(max_tile_b, _round_up(B, 16))
    b_pad = _round_up(B, tile_b)
    if b_pad != B:
        x_bf = jnp.pad(x_bf, ((0, b_pad - B), (0, 0)))

    grid = (b_pad // tile_b,)

    out = pl.pallas_call(
        tictactoe_mlp_kernel,
        out_shape=jax.ShapeDtypeStruct((b_pad, LANE), jnp.float32),
        grid_spec=pltpu.PrefetchScalarGridSpec(
            num_scalar_prefetch=0,
            grid=grid,
            in_specs=[
                # Activations: tiled over batch, auto double-buffered.
                pl.BlockSpec((tile_b, IN_DIM), lambda i: (i, 0)),
                # Weights / biases: constant index_map -> resident in VMEM.
                pl.BlockSpec((IN_DIM, HIDDEN), lambda i: (0, 0)),
                pl.BlockSpec((1, HIDDEN), lambda i: (0, 0)),
                pl.BlockSpec((HIDDEN, LANE), lambda i: (0, 0)),
                pl.BlockSpec((1, LANE), lambda i: (0, 0)),
            ],
            out_specs=pl.BlockSpec((tile_b, LANE), lambda i: (i, 0)),
        ),
        compiler_params=pltpu.CompilerParams(
            dimension_semantics=("parallel",),
        ),
    )(x_bf, w1_bf, b1_f32, w2_p, b2_p)

    return out[:B, :OUT_DIM]


def init_params(key):
    """Deterministic init matching nn.Linear shapes (weights stored transposed).

    PyTorch nn.Linear(in, out) has weight (out, in), bias (out,); we keep
    (in, out) / (1, out) with PyTorch-style uniform(-1/sqrt(in), 1/sqrt(in)).
    """
    k1, k2, k3, k4 = jax.random.split(key, 4)
    bound1 = 1.0 / jnp.sqrt(IN_DIM)
    bound2 = 1.0 / jnp.sqrt(HIDDEN)
    w1 = jax.random.uniform(k1, (IN_DIM, HIDDEN), jnp.float32, -bound1, bound1)
    b1 = jax.random.uniform(k2, (1, HIDDEN), jnp.float32, -bound1, bound1)
    w2 = jax.random.uniform(k3, (HIDDEN, OUT_DIM), jnp.float32, -bound2, bound2)
    b2 = jax.random.uniform(k4, (1, OUT_DIM), jnp.float32, -bound2, bound2)
    return w1, b1, w2, b2


if __name__ == "__main__":
    key = jax.random.PRNGKey(0)
    k_x, k_p = jax.random.split(key)

    batch = 2
    # Tic-tac-toe board states: 9 cells in {-1, 0, 1}, as float32.
    x = jax.random.randint(k_x, (batch, IN_DIM), -1, 2).astype(jnp.float32)

    w1, b1, w2, b2 = init_params(k_p)

    out = tictactoe_net_forward(x, w1, b1, w2, b2)
    out = jax.block_until_ready(out)
    assert out.shape == (batch, OUT_DIM)

    # Reference mirroring the kernel's bf16-operand / f32-accumulate math.
    xb = x.astype(jnp.bfloat16).astype(jnp.float32)
    w1b = w1.astype(jnp.bfloat16).astype(jnp.float32)
    w2b = w2.astype(jnp.bfloat16).astype(jnp.float32)
    h_ref = jnp.maximum(xb @ w1b + b1, 0.0)
    ref_bf16 = h_ref.astype(jnp.bfloat16).astype(jnp.float32) @ w2b + b2
    assert jnp.allclose(out, ref_bf16, atol=2e-3, rtol=2e-3)

    # Loose check against the pure-f32 PyTorch-equivalent math.
    ref_f32 = jnp.maximum(x @ w1 + b1, 0.0) @ w2 + b2
    assert jnp.allclose(out, ref_f32, atol=5e-2, rtol=5e-2)

    print("KERNEL_OK")
</pallas_src>

<mosaic_0001>
module attributes {stable_mosaic.version = 11 : i64} {
  func.func @tictactoe_mlp_kernel(%arg0: i32, %arg1: memref<16x9xbf16, #tpu.memory_space<vmem>>, %arg2: memref<9x128xbf16, #tpu.memory_space<vmem>>, %arg3: memref<1x128xf32, #tpu.memory_space<vmem>>, %arg4: memref<128x128xbf16, #tpu.memory_space<vmem>>, %arg5: memref<1x128xf32, #tpu.memory_space<vmem>>, %arg6: memref<16x128xf32, #tpu.memory_space<vmem>>) attributes {dimension_semantics = [#tpu.dimension_semantics<parallel>], iteration_bounds = array<i64: 1>, scalar_prefetch = 0 : i64, scratch_operands = 0 : i64, tpu.core_type = #tpu.core_type<tc>, window_params = [{transform_indices = @transform_0, window_bounds = array<i64: 16, 9>}, {pipeline_mode = #tpu.pipeline_mode<synchronous>, transform_indices = @transform_1, window_bounds = array<i64: 9, 128>}, {pipeline_mode = #tpu.pipeline_mode<synchronous>, transform_indices = @transform_2, window_bounds = array<i64: 1, 128>}, {pipeline_mode = #tpu.pipeline_mode<synchronous>, transform_indices = @transform_3, window_bounds = array<i64: 128, 128>}, {pipeline_mode = #tpu.pipeline_mode<synchronous>, transform_indices = @transform_4, window_bounds = array<i64: 1, 128>}, {transform_indices = @transform_5, window_bounds = array<i64: 16, 128>}]} {
    %c0 = arith.constant 0 : index
    %c0_0 = arith.constant 0 : index
    %0 = vector.load %arg1[%c0, %c0_0] : memref<16x9xbf16, #tpu.memory_space<vmem>>, vector<16x9xbf16>
    %c0_1 = arith.constant 0 : index
    %c0_2 = arith.constant 0 : index
    %1 = vector.load %arg2[%c0_1, %c0_2] : memref<9x128xbf16, #tpu.memory_space<vmem>>, vector<9x128xbf16>
    %cst = arith.constant dense<0.000000e+00> : vector<16x128xf32>
    %2 = tpu.matmul %0, %1, %cst {dimension_numbers = #tpu.dot_dimension_numbers<[1], [0], [0], [1], [0, 0, 1, 1], [], []>} : vector<16x9xbf16>, vector<9x128xbf16>, vector<16x128xf32> -> vector<16x128xf32>
    %c0_3 = arith.constant 0 : index
    %c0_4 = arith.constant 0 : index
    %3 = vector.load %arg3[%c0_3, %c0_4] : memref<1x128xf32, #tpu.memory_space<vmem>>, vector<1x128xf32>
    %4 = vector.broadcast %3 : vector<1x128xf32> to vector<16x128xf32>
    %5 = arith.addf %2, %4 : vector<16x128xf32>
    %cst_5 = arith.constant 0.000000e+00 : f32
    %6 = vector.broadcast %cst_5 : f32 to vector<16x128xf32>
    %7 = arith.maximumf %5, %6 : vector<16x128xf32>
    %8 = arith.truncf %7 : vector<16x128xf32> to vector<16x128xbf16>
    %c0_6 = arith.constant 0 : index
    %c0_7 = arith.constant 0 : index
    %9 = vector.load %arg4[%c0_6, %c0_7] : memref<128x128xbf16, #tpu.memory_space<vmem>>, vector<128x128xbf16>
    %cst_8 = arith.constant dense<0.000000e+00> : vector<16x128xf32>
    %10 = tpu.matmul %8, %9, %cst_8 {dimension_numbers = #tpu.dot_dimension_numbers<[1], [0], [0], [1], [0, 0, 1, 1], [], []>} : vector<16x128xbf16>, vector<128x128xbf16>, vector<16x128xf32> -> vector<16x128xf32>
    %c0_9 = arith.constant 0 : index
    %c0_10 = arith.constant 0 : index
    %11 = vector.load %arg5[%c0_9, %c0_10] : memref<1x128xf32, #tpu.memory_space<vmem>>, vector<1x128xf32>
    %12 = vector.broadcast %11 : vector<1x128xf32> to vector<16x128xf32>
    %13 = arith.addf %10, %12 : vector<16x128xf32>
    %c0_11 = arith.constant 0 : index
    %c0_12 = arith.constant 0 : index
    %14 = vector.load %arg6[%c0_11, %c0_12] : memref<16x128xf32, #tpu.memory_space<vmem>>, vector<16x128xf32>
    tpu.vector_store %arg6[%c0_11, %c0_12], %13 {strides = array<i32>} : memref<16x128xf32, #tpu.memory_space<vmem>>, vector<16x128xf32>,
    return
  }
  func.func @transform_0(%arg0: i32) -> (i32, i32) {
    %c0_i32 = arith.constant 0 : i32
    %c0_i32_0 = arith.constant 0 : i32
    return %arg0, %c0_i32 : i32, i32
  }
  func.func @transform_1(%arg0: i32) -> (i32, i32) {
    %c0_i32 = arith.constant 0 : i32
    %c0_i32_0 = arith.constant 0 : i32
    %c0_i32_1 = arith.constant 0 : i32
    return %c0_i32, %c0_i32_0 : i32, i32
  }
  func.func @transform_2(%arg0: i32) -> (i32, i32) {
    %c0_i32 = arith.constant 0 : i32
    %c0_i32_0 = arith.constant 0 : i32
    %c0_i32_1 = arith.constant 0 : i32
    return %c0_i32, %c0_i32_0 : i32, i32
  }
  func.func @transform_3(%arg0: i32) -> (i32, i32) {
    %c0_i32 = arith.constant 0 : i32
    %c0_i32_0 = arith.constant 0 : i32
    %c0_i32_1 = arith.constant 0 : i32
    return %c0_i32, %c0_i32_0 : i32, i32
  }
  func.func @transform_4(%arg0: i32) -> (i32, i32) {
    %c0_i32 = arith.constant 0 : i32
    %c0_i32_0 = arith.constant 0 : i32
    %c0_i32_1 = arith.constant 0 : i32
    return %c0_i32, %c0_i32_0 : i32, i32
  }
  func.func @transform_5(%arg0: i32) -> (i32, i32) {
    %c0_i32 = arith.constant 0 : i32
    %c0_i32_0 = arith.constant 0 : i32
    return %arg0, %c0_i32 : i32, i32
  }
}

</mosaic_0001>

<llo_original>
// kernel: tictactoe_net_forward.1
$region0: #{tictactoe_net_forward.1}
  #allocation0 [shape = 'u32[]', space=smem, size = 0x4, offset = 0x4, fixed_abs, tag = 'smem constant byte address 0x4 - core index']
  #allocation1 [shape = 'u32[72,128]{1,0:T(1,128)}', space=vmem, size = 0x9000, scoped, tag = 'internal scratch']
  %s0 = inlined_call_operand.vmem [shape: bf16[16,9], index: 0, kind: input, shape index: {}]
  %s1 = inlined_call_operand.vmem [shape: bf16[9,128], index: 1, kind: input, shape index: {}]
  %s2 = inlined_call_operand.vmem [shape: f32[1,128], index: 2, kind: input, shape index: {}]
  %s3 = inlined_call_operand.vmem [shape: bf16[128,128], index: 3, kind: input, shape index: {}]
  %s4 = inlined_call_operand.vmem [shape: f32[1,128], index: 4, kind: input, shape index: {}]
  %s5 = inlined_call_operand.vmem [shape: f32[16,128], index: 5, kind: output, shape index: {}]
  %s6 = sld [smem:[#allocation0]]
  $region30: #{tictactoe_net_forward.1} parent=0
    _
  %s8 = ssub.s32 1, %s6
  %s9 = scalar_select 0, %s8, %s6
  // Predicated region
  $region2: #{tictactoe_net_forward.1} parent=0 // pred_check
    _
  $region3: #{tictactoe_net_forward.1} parent=0 // pred_check_branch
    %11 = sbr.rel (0) target = $region5
  $region4: #{tictactoe_net_forward.1} parent=0 // pred_region
    _
  $region5: #{tictactoe_net_forward.1} parent=0 // pred_fallthru
    _
  // Predicated region
  $region6: #{tictactoe_net_forward.1} parent=0 // pred_check
    _
  $region7: #{tictactoe_net_forward.1} parent=0 // pred_check_branch
    %13 = sbr.rel (0) target = $region9
  $region8: #{tictactoe_net_forward.1} parent=0 // pred_region
    _
  $region9: #{tictactoe_net_forward.1} parent=0 // pred_fallthru
    _
  // Predicated region
  $region10: #{tictactoe_net_forward.1} parent=0 // pred_check
    _
  $region11: #{tictactoe_net_forward.1} parent=0 // pred_check_branch
    %15 = sbr.rel (0) target = $region13
  $region12: #{tictactoe_net_forward.1} parent=0 // pred_region
    _
  $region13: #{tictactoe_net_forward.1} parent=0 // pred_fallthru
    _
  // Predicated region
  $region14: #{tictactoe_net_forward.1} parent=0 // pred_check
    _
  $region15: #{tictactoe_net_forward.1} parent=0 // pred_check_branch
    %17 = sbr.rel (0) target = $region17
  $region16: #{tictactoe_net_forward.1} parent=0 // pred_region
    _
  $region17: #{tictactoe_net_forward.1} parent=0 // pred_fallthru
    _
  // Predicated region
  $region18: #{tictactoe_net_forward.1} parent=0 // pred_check
    _
  $region19: #{tictactoe_net_forward.1} parent=0 // pred_check_branch
    %19 = sbr.rel (0) target = $region21
  $region20: #{tictactoe_net_forward.1} parent=0 // pred_region
    _
  $region21: #{tictactoe_net_forward.1} parent=0 // pred_fallthru
    _
  %v21 = vld [vmem:[%s0] sm:$0xf]
  %v22 = vld [vmem:[%s0 + $0x4] sm:$0xf]
  %v23 = vld [vmem:[%s1] sm:$0xf]
  %v24 = vld [vmem:[%s1 + $0x4] sm:$0x1]
  %v25 = vld [vmem:[%s2] sm:$0x1]
  %v27 = vperm.slane %v25, 0
  %v31 = vunpack.c.l.b16 %v21
  %v32 = vunpack.c.l.b16 %v22
  %v33 = vpack.c.b16 %v32, %v31
  %v36 = vunpack.c.l.b16 %v23
  %v37 = vunpack.c.l.b16 %v24
  %v38 = vpack.c.b16 %v37, %v36
  %vm39 = vcmask 72704
  %v41 = vsel %vm39, %v33, 0
  %vm43 = vcmask 1043456
  %vm44 = vcmask 1044480
  %v45 = vsel %vm43, 4294967295, 65535
  %v46 = vsel %vm44, %v45, 0
  %v48 = vand.u32 %v38, %v46
  %50 = vmatpush.bf16.msra.mxu0 0
  %51 = vmatpush.bf16.msra.mxu0 0
  %52 = vmatpush.bf16.msra.mxu0 0
  %53 = vmatpush.bf16.msra.mxu0 0
  %54 = vmatpush.bf16.msra.mxu0 0
  %55 = vmatpush.bf16.msra.mxu0 0
  %56 = vmatpush.bf16.msra.mxu0 0
  %57 = vmatpush.bf16.msra.mxu0 %v48
  %58 = vmatmul.bf16.gmra.mxu0 %v41
  %v59 = vpop.f32.mrf.mxu0
  %v60 = vadd.f32 %v27, %v59
  %v61 = vpop.f32.mrf.mxu0
  %v62 = vadd.f32 %v27, %v61
  %63 = vdwg.mxu0
  %v64 = vmax.f32 %v60, 0.0
  %v65 = vmax.f32 %v62, 0.0
  %v66 = vpack.c.bf16 %v65, %v64
  %v67 = vld [vmem:[%s3] sm:$0xf]
  %v68 = vld [vmem:[%s3 + $0x4] sm:$0xf]
  %v69 = vld [vmem:[%s3 + $0x8] sm:$0xf]
  %v70 = vld [vmem:[%s3 + $0xc] sm:$0xf]
  %v71 = vld [vmem:[%s3 + $0x10] sm:$0xf]
  %v72 = vld [vmem:[%s3 + $0x14] sm:$0xf]
  %v73 = vld [vmem:[%s3 + $0x18] sm:$0xf]
  %v74 = vld [vmem:[%s3 + $0x1c] sm:$0xf]
  %v75 = vld [vmem:[%s3 + $0x20] sm:$0xf]
  %v76 = vld [vmem:[%s3 + $0x24] sm:$0xf]
  %v77 = vld [vmem:[%s3 + $0x28] sm:$0xf]
  %v78 = vld [vmem:[%s3 + $0x2c] sm:$0xf]
  %v79 = vld [vmem:[%s3 + $0x30] sm:$0xf]
  %v80 = vld [vmem:[%s3 + $0x34] sm:$0xf]
  %v81 = vld [vmem:[%s3 + $0x38] sm:$0xf]
  %v82 = vld [vmem:[%s3 + $0x3c] sm:$0xf]
  %v83 = vld [vmem:[%s4] sm:$0x1]
  %v85 = vperm.slane %v83, 0
  %v103 = vunpack.c.l.b16 %v67
  %v104 = vunpack.c.l.b16 %v68
  %v105 = vunpack.c.l.b16 %v69
  %v106 = vunpack.c.l.b16 %v70
  %v107 = vunpack.c.l.b16 %v71
  %v108 = vunpack.c.l.b16 %v72
  %v109 = vunpack.c.l.b16 %v73
  %v110 = vunpack.c.l.b16 %v74
  %v111 = vunpack.c.l.b16 %v75
  %v112 = vunpack.c.l.b16 %v76
  %v113 = vunpack.c.l.b16 %v77
  %v114 = vunpack.c.l.b16 %v78
  %v115 = vunpack.c.l.b16 %v79
  %v116 = vunpack.c.l.b16 %v80
  %v117 = vunpack.c.l.b16 %v81
  %v118 = vunpack.c.l.b16 %v82
  %v119 = vpack.c.b16 %v104, %v103
  %v120 = vpack.c.b16 %v106, %v105
  %v121 = vpack.c.b16 %v108, %v107
  %v122 = vpack.c.b16 %v110, %v109
  %v123 = vpack.c.b16 %v112, %v111
  %v124 = vpack.c.b16 %v114, %v113
  %v125 = vpack.c.b16 %v116, %v115
  %v126 = vpack.c.b16 %v118, %v117
  %135 = vmatpush.bf16.msra.mxu0 %v126
  %136 = vmatpush.bf16.msra.mxu0 %v125
  %137 = vmatpush.bf16.msra.mxu0 %v124
  %138 = vmatpush.bf16.msra.mxu0 %v123
  %139 = vmatpush.bf16.msra.mxu0 %v122
  %140 = vmatpush.bf16.msra.mxu0 %v121
  %141 = vmatpush.bf16.msra.mxu0 %v120
  %142 = vmatpush.bf16.msra.mxu0 %v119
  %143 = vmatmul.bf16.gmra.mxu0 %v66
  %v144 = vpop.f32.mrf.mxu0
  %v145 = vadd.f32 %v85, %v144
  %v146 = vpop.f32.mrf.mxu0
  %v147 = vadd.f32 %v85, %v146
  %148 = vdwg.mxu0
  %149 = vst [vmem:[%s5] sm:$0xff] %v145
  %150 = vst [vmem:[%s5 + $0x8] sm:$0xff] %v147
  // Predicated region
  $region22: #{tictactoe_net_forward.1} parent=0 // pred_check
    _
  $region23: #{tictactoe_net_forward.1} parent=0 // pred_check_branch
    %152 = sbr.rel (0) target = $region25
  $region24: #{tictactoe_net_forward.1} parent=0 // pred_region
    _
  $region25: #{tictactoe_net_forward.1} parent=0 // pred_fallthru
    _
  // Predicated region
  $region26: #{tictactoe_net_forward.1} parent=0 // pred_check
    _
  $region27: #{tictactoe_net_forward.1} parent=0 // pred_check_branch
    %154 = sbr.rel (0) target = $region29
  $region28: #{tictactoe_net_forward.1} parent=0 // pred_region
    _
  $region29: #{tictactoe_net_forward.1} parent=0 // pred_fallthru
    _

</llo_original>
